<compile_context>
chip_gen: v7x
topology: tpu7x:2x2x1
jax: 0.10.0
libtpu: 0.0.40
codegen_flags: <defaults>
</compile_context>

<pallas_src>
import jax
import jax.numpy as jnp
from jax.experimental import pallas as pl
from jax.experimental.pallas import tpu as pltpu

_EPS = 1e-8
_LANE = 128


def _round_up(x, m):
    return ((x + m - 1) // m) * m


def _vmem_capacity_bytes():
    """Physical per-core VMEM; conservative fallback if the query fails."""
    try:
        info = pltpu.get_tpu_info()
        cap = getattr(info, "vmem_capacity_bytes", None)
        if cap:
            return int(cap)
    except Exception:
        pass
    return 64 << 20  # v7x per-TC VMEM (smallest current generation) -> safe everywhere


# -----------------------------------------------------------------------------
# Kernels
# -----------------------------------------------------------------------------

def _pearson_simple_kernel(x_ref, y_ref, o_ref):
    """Full-D tile, single pass: raw moments only, no centered (tb, D) temporaries."""
    x = x_ref[...].astype(jnp.float32)
    y = y_ref[...].astype(jnp.float32)
    inv_d = 1.0 / x.shape[1]                           # static: block covers full D

    sx = jnp.sum(x, axis=1, keepdims=True)             # (tb, 1)
    sy = jnp.sum(y, axis=1, keepdims=True)
    sxy = jnp.sum(x * y, axis=1, keepdims=True)
    sxx = jnp.sum(x * x, axis=1, keepdims=True)
    syy = jnp.sum(y * y, axis=1, keepdims=True)

    mx = sx * inv_d
    my = sy * inv_d
    cov = sxy - mx * sy                                # == sum((x-mx)*(y-my))
    var_x = jnp.maximum(sxx - mx * sx, 0.0)
    var_y = jnp.maximum(syy - my * sy, 0.0)

    # 1/max(||v||, eps) == rsqrt(max(||v||^2, eps^2)); rsqrt runs on the EUP
    # slot and matches PyTorch cosine_similarity's per-norm eps clamp.
    inv_nx = jax.lax.rsqrt(jnp.maximum(var_x, _EPS * _EPS))
    inv_ny = jax.lax.rsqrt(jnp.maximum(var_y, _EPS * _EPS))
    o_ref[...] = (1.0 - cov * inv_nx * inv_ny).astype(o_ref.dtype)


def _make_pearson_tiled_kernel(true_d: int):
    """Grid (B-tiles, D-tiles): raw-moment accumulation over D in one (tb,128) scratch.

    Lane columns 0..4 of acc_ref hold sum(x), sum(y), sum(xy), sum(xx), sum(yy).
    Zero-padded D columns are inert; means use the true feature count `true_d`.
    Note: raw-moment accumulation can cancel catastrophically when the per-row
    DC offset dwarfs the row std; acceptable for typical (near-centered) data.
    """
    inv_d = 1.0 / float(true_d)

    def kernel(x_ref, y_ref, o_ref, acc_ref):
        k = pl.program_id(1)

        @pl.when(k == 0)
        def _():
            acc_ref[...] = jnp.zeros_like(acc_ref)

        x = x_ref[...].astype(jnp.float32)
        y = y_ref[...].astype(jnp.float32)
        acc_ref[:, 0:1] += jnp.sum(x, axis=1, keepdims=True)
        acc_ref[:, 1:2] += jnp.sum(y, axis=1, keepdims=True)
        acc_ref[:, 2:3] += jnp.sum(x * y, axis=1, keepdims=True)
        acc_ref[:, 3:4] += jnp.sum(x * x, axis=1, keepdims=True)
        acc_ref[:, 4:5] += jnp.sum(y * y, axis=1, keepdims=True)

        @pl.when(k == pl.num_programs(1) - 1)
        def _():
            sx = acc_ref[:, 0:1]
            sy = acc_ref[:, 1:2]
            sxy = acc_ref[:, 2:3]
            sxx = acc_ref[:, 3:4]
            syy = acc_ref[:, 4:5]
            mx = sx * inv_d
            my = sy * inv_d
            cov = sxy - mx * sy
            var_x = jnp.maximum(sxx - mx * sx, 0.0)
            var_y = jnp.maximum(syy - my * sy, 0.0)
            inv_nx = jax.lax.rsqrt(jnp.maximum(var_x, _EPS * _EPS))
            inv_ny = jax.lax.rsqrt(jnp.maximum(var_y, _EPS * _EPS))
            o_ref[...] = (1.0 - cov * inv_nx * inv_ny).astype(o_ref.dtype)

    return kernel


# -----------------------------------------------------------------------------
# Wrapper
# -----------------------------------------------------------------------------

def pearson_distance(x1, x2, *, tb=None, td=None,
                     vmem_budget_bytes=None, vmem_limit_bytes=None):
    """1 - Pearson correlation of matching rows of x1, x2 (both (B, D))."""
    assert x1.shape == x2.shape and x1.ndim == 2, "expected matching (B, D) inputs"
    B, D = x1.shape

    it1 = jnp.dtype(x1.dtype).itemsize
    it2 = jnp.dtype(x2.dtype).itemsize
    bp = it1 + it2                               # streamed bytes/element over both inputs
    sub = 8 * max(1, 4 // min(it1, it2))         # sublane multiple: 8 f32 / 16 bf16 / 32 int8

    cap = _vmem_capacity_bytes()
    if vmem_budget_bytes is None:
        # Input-pipeline budget: conservative 16 MiB on 64 MiB-VMEM chips (v7x),
        # 32 MiB on 128 MiB-VMEM chips (v5e / v6e).
        vmem_budget_bytes = (16 << 20) if cap <= (64 << 20) else (32 << 20)
    if vmem_limit_bytes is None:
        vmem_limit_bytes = min(int(cap * 0.65), vmem_budget_bytes + (16 << 20))

    B_ceil = _round_up(B, sub)
    d_lanes = _round_up(D, _LANE)                # lane-padded VMEM width of a full row
    out_row = 2 * _LANE * 4                      # dbl-buffered (tb,1) f32 out, lane padded
    acc_row = _LANE * 4                          # tiled-path (tb,128) f32 scratch

    # --- choose td (feature tile) --------------------------------------------
    if td is None:
        if sub * (2 * bp * d_lanes + out_row) <= vmem_budget_bytes:
            td = D                               # whole row fits: single pass over D
        else:                                    # huge D: tiled raw-moment reduction
            tb_probe = tb if tb is not None else min(B_ceil, 256)
            avail = vmem_budget_bytes - tb_probe * (out_row + acc_row)
            td = max((avail // (2 * bp * tb_probe)) // _LANE, 1) * _LANE
            td = min(td, d_lanes)
    assert td == D or td % _LANE == 0, "D tile must be a multiple of 128 (or full D)"

    # --- choose tb (batch tile) from the byte budget --------------------------
    if td == D:
        row_bytes = 2 * bp * d_lanes + out_row
    else:
        row_bytes = 2 * bp * td + out_row + acc_row
    if tb is None:
        tb = max(sub, (vmem_budget_bytes // row_bytes) // sub * sub)
    assert tb % sub == 0, f"batch tile must be a multiple of {sub} for this dtype"
    tb = min(tb, B_ceil)
    # Ensure >=2 grid steps on the 'parallel' batch axis when the batch is big
    # enough; v7x shards them across its 2 TensorCores (near-free on 1-TC chips).
    if tb >= B_ceil and B_ceil >= 2 * sub:
        tb = max(sub, (B_ceil // 2) // sub * sub)

    # --- pad (zero rows -> distance 1.0, sliced off; zero cols inert) ---------
    B_pad = _round_up(B, tb)
    D_pad = D if td == D else _round_up(D, td)
    if (B_pad, D_pad) != (B, D):
        pad = ((0, B_pad - B), (0, D_pad - D))
        x1 = jnp.pad(x1, pad)
        x2 = jnp.pad(x2, pad)

    cost = pl.CostEstimate(flops=int(10 * B * D),
                           transcendentals=int(2 * B),
                           bytes_accessed=int(B * D * bp + B * 4))

    if td == D:
        out2d = pl.pallas_call(
            _pearson_simple_kernel,
            out_shape=jax.ShapeDtypeStruct((B_pad, 1), jnp.float32),
            grid=(B_pad // tb,),
            in_specs=[
                pl.BlockSpec((tb, D), lambda i: (i, 0)),
                pl.BlockSpec((tb, D), lambda i: (i, 0)),
            ],
            out_specs=pl.BlockSpec((tb, 1), lambda i: (i, 0)),
            compiler_params=pltpu.CompilerParams(
                dimension_semantics=("parallel",),
                vmem_limit_bytes=vmem_limit_bytes),
            cost_estimate=cost,
        )(x1, x2)
    else:
        out2d = pl.pallas_call(
            _make_pearson_tiled_kernel(D),
            out_shape=jax.ShapeDtypeStruct((B_pad, 1), jnp.float32),
            grid=(B_pad // tb, D_pad // td),     # reduction axis last
            in_specs=[
                pl.BlockSpec((tb, td), lambda i, k: (i, k)),
                pl.BlockSpec((tb, td), lambda i, k: (i, k)),
            ],
            out_specs=pl.BlockSpec((tb, 1), lambda i, k: (i, 0)),
            scratch_shapes=[pltpu.VMEM((tb, _LANE), jnp.float32)],
            compiler_params=pltpu.CompilerParams(
                dimension_semantics=("parallel", "arbitrary"),
                vmem_limit_bytes=vmem_limit_bytes),
            cost_estimate=cost,
        )(x1, x2)

    return out2d[:B, 0]


# -----------------------------------------------------------------------------
# Self-test
# -----------------------------------------------------------------------------

if __name__ == "__main__":
    key = jax.random.PRNGKey(0)
    k1, k2, k3, k4 = jax.random.split(key, 4)

    def reference(x, y):
        # Pure-JAX mirror of the PyTorch module (mean-center, then cosine sim).
        xm = x - jnp.mean(x, axis=1, keepdims=True)
        ym = y - jnp.mean(y, axis=1, keepdims=True)
        nx = jnp.maximum(jnp.linalg.norm(xm, axis=1), _EPS)
        ny = jnp.maximum(jnp.linalg.norm(ym, axis=1), _EPS)
        return 1.0 - jnp.sum(xm * ym, axis=1) / (nx * ny)

    # 1) Small embedding batch -> single-pass (full-D) kernel path.
    B, D = 8, 32
    x1 = jax.random.normal(k1, (B, D), dtype=jnp.float32)
    x2 = jax.random.normal(k2, (B, D), dtype=jnp.float32)
    out = pearson_distance(x1, x2)
    jax.block_until_ready(out)
    assert out.shape == (B,)
    assert jnp.allclose(out, reference(x1, x2), atol=2e-4, rtol=2e-4)

    # 2) Explicit D tile -> exercises the D-tiled accumulator path.
    B2, D2 = 16, 256
    y1 = jax.random.normal(k3, (B2, D2), dtype=jnp.float32)
    y2 = jax.random.normal(k4, (B2, D2), dtype=jnp.float32)
    out2 = pearson_distance(y1, y2, td=128)
    jax.block_until_ready(out2)
    assert out2.shape == (B2,)
    assert jnp.allclose(out2, reference(y1, y2), atol=2e-4, rtol=2e-4)

    print("KERNEL_OK")
</pallas_src>

<mosaic_0001>
module attributes {stable_mosaic.version = 11 : i64} {
  func.func @_pearson_simple_kernel(%arg0: i32, %arg1: memref<8x32xf32, #tpu.memory_space<vmem>>, %arg2: memref<8x32xf32, #tpu.memory_space<vmem>>, %arg3: memref<8x1xf32, #tpu.memory_space<vmem>>) attributes {dimension_semantics = [#tpu.dimension_semantics<parallel>], iteration_bounds = array<i64: 1>, scalar_prefetch = 0 : i64, scratch_operands = 0 : i64, tpu.core_type = #tpu.core_type<tc>, window_params = [{transform_indices = @transform_0, window_bounds = array<i64: 8, 32>}, {transform_indices = @transform_1, window_bounds = array<i64: 8, 32>}, {transform_indices = @transform_2, window_bounds = array<i64: 8, 1>}]} {
    %c0 = arith.constant 0 : index
    %c0_0 = arith.constant 0 : index
    %0 = vector.load %arg1[%c0, %c0_0] : memref<8x32xf32, #tpu.memory_space<vmem>>, vector<8x32xf32>
    %c0_1 = arith.constant 0 : index
    %c0_2 = arith.constant 0 : index
    %1 = vector.load %arg2[%c0_1, %c0_2] : memref<8x32xf32, #tpu.memory_space<vmem>>, vector<8x32xf32>
    %cst = arith.constant dense<0.000000e+00> : vector<8xf32>
    %2 = vector.multi_reduction <add>, %0, %cst [1] : vector<8x32xf32> to vector<8xf32>
    %3 = vector.shape_cast %2 : vector<8xf32> to vector<8x1xf32>
    %cst_3 = arith.constant dense<0.000000e+00> : vector<8xf32>
    %4 = vector.multi_reduction <add>, %1, %cst_3 [1] : vector<8x32xf32> to vector<8xf32>
    %5 = vector.shape_cast %4 : vector<8xf32> to vector<8x1xf32>
    %6 = arith.mulf %0, %1 : vector<8x32xf32>
    %cst_4 = arith.constant dense<0.000000e+00> : vector<8xf32>
    %7 = vector.multi_reduction <add>, %6, %cst_4 [1] : vector<8x32xf32> to vector<8xf32>
    %8 = vector.shape_cast %7 : vector<8xf32> to vector<8x1xf32>
    %9 = arith.mulf %0, %0 : vector<8x32xf32>
    %cst_5 = arith.constant dense<0.000000e+00> : vector<8xf32>
    %10 = vector.multi_reduction <add>, %9, %cst_5 [1] : vector<8x32xf32> to vector<8xf32>
    %11 = vector.shape_cast %10 : vector<8xf32> to vector<8x1xf32>
    %12 = arith.mulf %1, %1 : vector<8x32xf32>
    %cst_6 = arith.constant dense<0.000000e+00> : vector<8xf32>
    %13 = vector.multi_reduction <add>, %12, %cst_6 [1] : vector<8x32xf32> to vector<8xf32>
    %14 = vector.shape_cast %13 : vector<8xf32> to vector<8x1xf32>
    %cst_7 = arith.constant 3.125000e-02 : f32
    %15 = vector.broadcast %cst_7 : f32 to vector<8x1xf32>
    %16 = arith.mulf %3, %15 : vector<8x1xf32>
    %cst_8 = arith.constant 3.125000e-02 : f32
    %17 = vector.broadcast %cst_8 : f32 to vector<8x1xf32>
    %18 = arith.mulf %5, %17 : vector<8x1xf32>
    %19 = arith.mulf %16, %5 : vector<8x1xf32>
    %20 = arith.subf %8, %19 : vector<8x1xf32>
    %21 = arith.mulf %16, %3 : vector<8x1xf32>
    %22 = arith.subf %11, %21 : vector<8x1xf32>
    %cst_9 = arith.constant 0.000000e+00 : f32
    %23 = vector.broadcast %cst_9 : f32 to vector<8x1xf32>
    %24 = arith.maximumf %22, %23 : vector<8x1xf32>
    %25 = arith.mulf %18, %5 : vector<8x1xf32>
    %26 = arith.subf %14, %25 : vector<8x1xf32>
    %cst_10 = arith.constant 0.000000e+00 : f32
    %27 = vector.broadcast %cst_10 : f32 to vector<8x1xf32>
    %28 = arith.maximumf %26, %27 : vector<8x1xf32>
    %cst_11 = arith.constant 1.000000e-16 : f32
    %29 = vector.broadcast %cst_11 : f32 to vector<8x1xf32>
    %30 = arith.maximumf %24, %29 : vector<8x1xf32>
    %31 = math.rsqrt %30 : vector<8x1xf32>
    %cst_12 = arith.constant 1.000000e-16 : f32
    %32 = vector.broadcast %cst_12 : f32 to vector<8x1xf32>
    %33 = arith.maximumf %28, %32 : vector<8x1xf32>
    %34 = math.rsqrt %33 : vector<8x1xf32>
    %35 = arith.mulf %20, %31 : vector<8x1xf32>
    %36 = arith.mulf %35, %34 : vector<8x1xf32>
    %cst_13 = arith.constant 1.000000e+00 : f32
    %37 = vector.broadcast %cst_13 : f32 to vector<8x1xf32>
    %38 = arith.subf %37, %36 : vector<8x1xf32>
    %c0_14 = arith.constant 0 : index
    %c0_15 = arith.constant 0 : index
    %39 = vector.load %arg3[%c0_14, %c0_15] : memref<8x1xf32, #tpu.memory_space<vmem>>, vector<8x1xf32>
    tpu.vector_store %arg3[%c0_14, %c0_15], %38 {strides = array<i32>} : memref<8x1xf32, #tpu.memory_space<vmem>>, vector<8x1xf32>,
    return
  }
  func.func @transform_0(%arg0: i32) -> (i32, i32) {
    %c0_i32 = arith.constant 0 : i32
    %c0_i32_0 = arith.constant 0 : i32
    return %arg0, %c0_i32 : i32, i32
  }
  func.func @transform_1(%arg0: i32) -> (i32, i32) {
    %c0_i32 = arith.constant 0 : i32
    %c0_i32_0 = arith.constant 0 : i32
    return %arg0, %c0_i32 : i32, i32
  }
  func.func @transform_2(%arg0: i32) -> (i32, i32) {
    %c0_i32 = arith.constant 0 : i32
    %c0_i32_0 = arith.constant 0 : i32
    return %arg0, %c0_i32 : i32, i32
  }
}

</mosaic_0001>

<llo_original>
// kernel: tpu_custom_call.1
$region0: #{tpu_custom_call.1}
  #allocation0 [shape = 'u32[]', space=smem, size = 0x4, offset = 0x4, fixed_abs, tag = 'smem constant byte address 0x4 - core index']
  #allocation1 [shape = 'u32[144,128]{1,0:T(1,128)}', space=vmem, size = 0x12000, scoped, tag = 'internal scratch']
  %s0 = inlined_call_operand.hbm [shape: f32[8,32], index: 0, kind: input, shape index: {}]
  %s1 = inlined_call_operand.hbm [shape: f32[8,32], index: 1, kind: input, shape index: {}]
  %s2 = inlined_call_operand.vmem [shape: f32[8,1], index: 2, kind: output, shape index: {}]
  %s3 = sld [smem:[#allocation0]]
  $region26: #{tpu_custom_call.1} parent=0
    _
  %s5 = ssub.s32 1, %s3
  %s6 = scalar_select 0, %s5, %s3
  $region1: #{tpu_custom_call.1} parent=0
    #allocation2 [shape = 'u8[4096]{0}', space=vmem, size = 0x1000, scoped, tag = 'input window, operand 0, single buffered']
    #allocation3 [shape = 's32[1]{0}', space=sflag, size = 0x4, scoped, tag = 'scoped memory for tpu_custom_call.1']
    #allocation4 [shape = 'u8[4096]{0}', space=vmem, size = 0x1000, scoped, tag = 'input window, operand 1, single buffered']
    #allocation5 [shape = 's32[1]{0}', space=sflag, size = 0x4, scoped, tag = 'scoped memory for tpu_custom_call.1']
    %7 = vsyncpa [#allocation3], 0
    %8 = vsyncpa [#allocation5], 0
    // Predicated region
    $region2: #{tpu_custom_call.1} parent=1 // pred_check
      _
    $region3: #{tpu_custom_call.1} parent=1 // pred_check_branch
      %10 = sbr.rel (0) target = $region5
    $region4: #{tpu_custom_call.1} parent=1 // pred_region
      %s12 = ssub.s32 128, 128
      %13 = vsyncadd [#allocation3], %s12
      %s15 = sshll.u32 [#allocation2], 4
      %s16 = int_to_ptr.vmem [resolvable:$true] %s15
      %18 = dma.hbm_to_vmem [thread:$0]  %s0, 128, %s16, [#allocation3]
    $region5: #{tpu_custom_call.1} parent=1 // pred_fallthru
      _
    // Predicated region
    $region6: #{tpu_custom_call.1} parent=1 // pred_check
      _
    $region7: #{tpu_custom_call.1} parent=1 // pred_check_branch
      %20 = sbr.rel (0) target = $region9
    $region8: #{tpu_custom_call.1} parent=1 // pred_region
      %s22 = ssub.s32 128, 128
      %23 = vsyncadd [#allocation5], %s22
      %s25 = sshll.u32 [#allocation4], 4
      %s26 = int_to_ptr.vmem [resolvable:$true] %s25
      %28 = dma.hbm_to_vmem [thread:$0]  %s1, 128, %s26, [#allocation5]
    $region9: #{tpu_custom_call.1} parent=1 // pred_fallthru
      _
    // Predicated region
    $region10: #{tpu_custom_call.1} parent=1 // pred_check
      _
    $region11: #{tpu_custom_call.1} parent=1 // pred_check_branch
      %30 = sbr.rel (0) target = $region13
    $region12: #{tpu_custom_call.1} parent=1 // pred_region
      %31 = dma.done [#allocation3], 128
    $region13: #{tpu_custom_call.1} parent=1 // pred_fallthru
      _
    // Predicated region
    $region14: #{tpu_custom_call.1} parent=1 // pred_check
      _
    $region15: #{tpu_custom_call.1} parent=1 // pred_check_branch
      %33 = sbr.rel (0) target = $region17
    $region16: #{tpu_custom_call.1} parent=1 // pred_region
      %34 = dma.done [#allocation5], 128
    $region17: #{tpu_custom_call.1} parent=1 // pred_fallthru
      _
    %v35 = vld [vmem:[#allocation2] sm:$0xff]
    %v36 = vld [vmem:[#allocation4] sm:$0xff]
    %vm37 = vcmask 261120
    %v38 = vsel %vm37, %v35, 0.0
    %39 = vadd.xlane.f32.xlu0 %v38
    %v40 = vpop.xlane.xlu0 %39
    %v41 = vsel %vm37, %v36, 0.0
    %42 = vadd.xlane.f32.xlu0 %v41
    %v43 = vpop.xlane.xlu0 %42
    %v44 = vmul.f32 %v35, %v36
    %v45 = vsel %vm37, %v44, 0.0
    %46 = vadd.xlane.f32.xlu0 %v45
    %v47 = vpop.xlane.xlu0 %46
    %v48 = vmul.f32 %v35, %v35
    %v49 = vsel %vm37, %v48, 0.0
    %50 = vadd.xlane.f32.xlu0 %v49
    %v51 = vpop.xlane.xlu0 %50
    %v52 = vmul.f32 %v36, %v36
    %v53 = vsel %vm37, %v52, 0.0
    %54 = vadd.xlane.f32.xlu0 %v53
    %v55 = vpop.xlane.xlu0 %54
    %v56 = vmul.f32 %v40, 0.03125
    %v57 = vmul.f32 %v43, 0.03125
    %v58 = vmul.f32 %v56, %v43
    %v59 = vsub.f32 %v47, %v58
    %v60 = vmul.f32 %v56, %v40
    %v61 = vsub.f32 %v51, %v60
    %v62 = vmax.f32 %v61, 0.0
    %v63 = vmul.f32 %v57, %v43
    %v64 = vsub.f32 %v55, %v63
    %v65 = vmax.f32 %v64, 0.0
    %v66 = vmax.f32 %v62, 1e-16
    %v67 = vrsqrt.pop %v66
    %v68 = vmax.f32 %v65, 1e-16
    %v69 = vrsqrt.pop %v68
    %v70 = vmul.f32 %v59, %v67
    %v71 = vmul.f32 %v70, %v69
    %v72 = vsub.f32 1.0, %v71
    %vm73 = vcmask 7168
    %74 = vst.msk [vmem:[%s2] sm:$0xff] %vm73, %v72
    // Predicated region
    $region18: #{tpu_custom_call.1} parent=1 // pred_check
      _
    $region19: #{tpu_custom_call.1} parent=1 // pred_check_branch
      %76 = sbr.rel (0) target = $region21
    $region20: #{tpu_custom_call.1} parent=1 // pred_region
      _
    $region21: #{tpu_custom_call.1} parent=1 // pred_fallthru
      _
    // Predicated region
    $region22: #{tpu_custom_call.1} parent=1 // pred_check
      _
    $region23: #{tpu_custom_call.1} parent=1 // pred_check_branch
      %78 = sbr.rel (0) target = $region25
    $region24: #{tpu_custom_call.1} parent=1 // pred_region
      _
    $region25: #{tpu_custom_call.1} parent=1 // pred_fallthru
      _
    %79 = vsyncpa [#allocation3], 1
    %80 = vsyncpa [#allocation5], 1

</llo_original>
